<compile_context>
chip_gen: v5e
topology: v5e:2x2
jax: 0.10.0
libtpu: 0.0.40
codegen_flags: <defaults>
</compile_context>

<pallas_src>
import functools

import jax
import jax.numpy as jnp
from jax.experimental import pallas as pl
from jax.experimental.pallas import tpu as pltpu


def _round_up(a: int, b: int) -> int:
    return ((a + b - 1) // b) * b


def _attn_gated_kernel(x_ref, wab_ref, bab_ref, wc_ref, bc_ref, lnw_ref, lnb_ref,
                       *out_refs, normalize: bool, d: int):
    a_out_ref = out_refs[0]

    if normalize:
        # torch.nn.LayerNorm(L): biased variance over last dim, eps=1e-5,
        # elementwise affine (gamma/beta). Kept in f32 end-to-end.
        x = x_ref[...].astype(jnp.float32)
        mean = jnp.mean(x, axis=-1, keepdims=True)
        var = jnp.mean((x - mean) * (x - mean), axis=-1, keepdims=True)
        x = (x - mean) * jax.lax.rsqrt(var + 1e-5)
        x = x * lnw_ref[...] + lnb_ref[...]
        out_refs[1][...] = x.astype(out_refs[1].dtype)
        x_mxu = x.astype(jnp.bfloat16)
    else:
        # x was streamed from HBM as bf16; feed the MXU directly (no round-trip).
        x_mxu = x_ref[...]

    # Fused gate projection: one MXU matmul for [a | b/2], f32 accumulation.
    ab = jnp.dot(x_mxu, wab_ref[...], preferred_element_type=jnp.float32)
    ab = ab + bab_ref[...]
    # sigmoid(z) == 0.5 * (1 + tanh(z/2)); the 1/2 factors were folded into
    # (Wb, bb) and Wc at prepare time, so one tanh covers both nonlinearities.
    t = jnp.tanh(ab)
    gated = (t[:, :d] * (t[:, d:] + 1.0)).astype(jnp.bfloat16)

    # Final projection on a zero-padded 128-lane Wc (MXU-friendly).  Only the
    # first n_classes columns are stored, so the HBM write of A is narrow.
    A = jnp.dot(gated, wc_ref[...], preferred_element_type=jnp.float32)
    A = A + bc_ref[...]
    a_out_ref[...] = A[:, : a_out_ref.shape[-1]].astype(a_out_ref.dtype)


def prepare_params(params):
    """One-time weight preprocessing (hoisted out of the per-bag call).

    - Fuses the two gate projections into a single (L, 2D) bf16 matmul.
    - Pre-scales the sigmoid branch by 0.5 so sigmoid(z) = 0.5*(1 + tanh(z/2))
      turns both nonlinearities into one fused tanh; the matching 0.5 is folded
      into Wc.
    - Zero-pads Wc / bc to a 128-lane MXU tile.
    """
    wa, ba = params["wa"], params["ba"]
    wb, bb = params["wb"], params["bb"]
    wc, bc = params["wc"], params["bc"]
    L, D = wa.shape
    C = wc.shape[1]
    C_pad = _round_up(max(C, 1), 128)

    wab = jnp.concatenate([wa, 0.5 * wb], axis=1).astype(jnp.bfloat16)
    bab = jnp.concatenate([ba, 0.5 * bb], axis=1).astype(jnp.float32)
    wc_p = jnp.zeros((D, C_pad), jnp.bfloat16).at[:, :C].set(
        (0.5 * wc).astype(jnp.bfloat16))
    bc_p = jnp.zeros((1, C_pad), jnp.float32).at[:, :C].set(bc.astype(jnp.float32))
    ln_w = params.get("ln_w", jnp.ones((1, L), jnp.float32))
    ln_b = params.get("ln_b", jnp.zeros((1, L), jnp.float32))
    ln_w = jnp.asarray(ln_w, jnp.float32).reshape(1, L)
    ln_b = jnp.asarray(ln_b, jnp.float32).reshape(1, L)
    return dict(wab=wab, bab=bab, wc=wc_p, bc=bc_p, ln_w=ln_w, ln_b=ln_b)


def attn_net_gated(x, prepared, *, n_classes, normalize=False, tile_n=1024,
                   x_out_dtype=jnp.float32):
    """x: (N, L). prepared: output of prepare_params. Returns (A, x) as in torch.

    x_out_dtype: opt-in bf16 for the LayerNorm passthrough output (halves its
    HBM write); default f32 matches the PyTorch module exactly.
    """
    N, L = x.shape
    D = prepared["wc"].shape[0]
    C = int(n_classes)
    C_pad = prepared["wc"].shape[1]
    assert prepared["wab"].shape == (L, 2 * D)

    # normalize=False: the MXU is the only consumer of x -> stream it as bf16
    # (halves the dominant HBM read).  normalize=True: keep f32 for LN + x_out.
    x_in = x.astype(jnp.float32 if normalize else jnp.bfloat16)

    SUB = 16  # row granularity: bf16 sublane packing (also valid for f32)
    tn_req = max(SUB, (int(tile_n) // SUB) * SUB)
    if N < SUB:
        # Tiny bag: pad to one 16-row tile (negligible copy of a tiny array).
        x_in = jnp.pad(x_in, ((0, SUB - N), (0, 0)))
        n_rows, TN = SUB, SUB
    else:
        n_rows = N
        n_floor = (N // SUB) * SUB                       # keep block <= array
        half_cap = _round_up(max(1, -(-N // 2)), SUB)    # >=2 steps -> v7x 2 TCs
        TN = max(SUB, min(tn_req, n_floor, half_cap))
    # Ragged last block: OOB reads are row-local, OOB writes are dropped.
    grid = (pl.cdiv(n_rows, TN),)

    kernel = functools.partial(_attn_gated_kernel, normalize=normalize, d=D)

    in_specs = [
        pl.BlockSpec((TN, L), lambda i: (i, 0)),       # x tile (streamed)
        pl.BlockSpec((L, 2 * D), lambda i: (0, 0)),    # fused gate weights (resident)
        pl.BlockSpec((1, 2 * D), lambda i: (0, 0)),    # fused gate biases (resident)
        pl.BlockSpec((D, C_pad), lambda i: (0, 0)),    # Wc padded (resident)
        pl.BlockSpec((1, C_pad), lambda i: (0, 0)),    # bc padded (resident)
        pl.BlockSpec((1, L), lambda i: (0, 0)),        # LN gamma (resident)
        pl.BlockSpec((1, L), lambda i: (0, 0)),        # LN beta (resident)
    ]

    a_spec = pl.BlockSpec((TN, C), lambda i: (i, 0))           # narrow A store
    a_shape = jax.ShapeDtypeStruct((n_rows, C), jnp.float32)
    if normalize:
        out_specs = (a_spec, pl.BlockSpec((TN, L), lambda i: (i, 0)))
        out_shape = (a_shape, jax.ShapeDtypeStruct((n_rows, L), x_out_dtype))
    else:
        out_specs = (a_spec,)
        out_shape = (a_shape,)

    x_isize = jnp.dtype(x_in.dtype).itemsize
    xo_isize = jnp.dtype(x_out_dtype).itemsize

    # Explicit VMEM budget: block buffers are double-buffered; leave headroom
    # for f32 intermediates.  Clamp to [32 MiB, 64 MiB] (v7x physical = 64 MiB).
    vmem_est = (
        2 * TN * L * x_isize
        + 2 * TN * C * 4
        + (2 * TN * L * xo_isize if normalize else 0)
        + 2 * (L * 2 * D * 2 + 2 * D * 4 + D * C_pad * 2 + C_pad * 4 + 2 * L * 4)
        + 4 * TN * max(2 * D, C_pad) * 4)
    vmem_limit = int(min(max(vmem_est, 32 * 1024 * 1024), 64 * 1024 * 1024))

    flops = 2 * n_rows * L * (2 * D) + 2 * n_rows * D * C_pad
    transcendentals = n_rows * 2 * D  # single fused tanh over both gate halves
    bytes_accessed = (
        n_rows * L * x_isize
        + (L * 2 * D + D * C_pad) * 2 + (2 * D + C_pad + 2 * L) * 4
        + n_rows * C * 4
        + (n_rows * L * xo_isize if normalize else 0))

    outs = pl.pallas_call(
        kernel,
        grid=grid,
        in_specs=in_specs,
        out_specs=out_specs,
        out_shape=out_shape,
        compiler_params=pltpu.CompilerParams(
            dimension_semantics=("parallel",),
            vmem_limit_bytes=vmem_limit),
        cost_estimate=pl.CostEstimate(
            flops=flops,
            transcendentals=transcendentals,
            bytes_accessed=bytes_accessed),
    )(x_in, prepared["wab"], prepared["bab"], prepared["wc"], prepared["bc"],
      prepared["ln_w"], prepared["ln_b"])

    A = outs[0][:N] if n_rows != N else outs[0]
    if normalize:
        x_out = outs[1][:N] if n_rows != N else outs[1]
    else:
        x_out = x  # passthrough: no extra HBM write for the dominant tensor
    return A, x_out


def init_params(key, L, D, n_classes):
    """PyTorch-Linear-style init: U(-1/sqrt(fan_in), 1/sqrt(fan_in)).

    Weights stored pre-transposed as (in_features, out_features); biases as
    (1, out_features).  LayerNorm affine at torch init: weight=1, bias=0.
    """
    ks = jax.random.split(key, 6)

    def lin(kw, kb, fan_in, fan_out):
        bound = 1.0 / jnp.sqrt(fan_in)
        w = jax.random.uniform(kw, (fan_in, fan_out), jnp.float32, -bound, bound)
        b = jax.random.uniform(kb, (1, fan_out), jnp.float32, -bound, bound)
        return w, b

    wa, ba = lin(ks[0], ks[1], L, D)
    wb, bb = lin(ks[2], ks[3], L, D)
    wc, bc = lin(ks[4], ks[5], D, n_classes)
    ln_w = jnp.ones((1, L), jnp.float32)
    ln_b = jnp.zeros((1, L), jnp.float32)
    return dict(wa=wa, ba=ba, wb=wb, bb=bb, wc=wc, bc=bc, ln_w=ln_w, ln_b=ln_b)


def _reference(x, p, normalize):
    """Pure-JAX f32 reference of the PyTorch forward."""
    if normalize:
        mean = jnp.mean(x, axis=-1, keepdims=True)
        var = jnp.mean((x - mean) ** 2, axis=-1, keepdims=True)
        x = (x - mean) * jax.lax.rsqrt(var + 1e-5)
        x = x * p["ln_w"] + p["ln_b"]
    a = jnp.tanh(x @ p["wa"] + p["ba"])
    b = jax.nn.sigmoid(x @ p["wb"] + p["bb"])
    A = (a * b) @ p["wc"] + p["bc"]
    return A, x


if __name__ == "__main__":
    # Small shapes consistent with the module (defaults L=512, D=256, n_classes=1):
    # a bag of N=50 instances, L=128 features, D=128 hidden, 1 class.
    N, L, D, n_classes = 50, 128, 128, 1

    key = jax.random.PRNGKey(0)
    kx, kp, kt = jax.random.split(key, 3)
    x = jax.random.normal(kx, (N, L), jnp.float32)
    params = init_params(kp, L, D, n_classes)
    prepared = prepare_params(params)   # one-time weight prep (hoisted)

    for normalize in (False, True):
        # tile_n=16 exercises the multi-step ragged grid; the default exercises
        # the ceil(N/2) tile cap (2 balanced steps).
        for tile_n in (16, 1024):
            A, x_out = attn_net_gated(x, prepared, n_classes=n_classes,
                                      normalize=normalize, tile_n=tile_n)
            jax.block_until_ready((A, x_out))

            A_ref, x_ref = _reference(x, params, normalize)
            assert A.shape == (N, n_classes), A.shape
            assert x_out.shape == (N, L), x_out.shape
            # bf16 matmuls with f32 accumulation vs f32 reference: loose tol on A.
            assert jnp.allclose(A, A_ref, atol=3e-2), "A mismatch"
            # LayerNorm / passthrough path is f32 end-to-end: tight tol on x.
            assert jnp.allclose(x_out, x_ref, atol=1e-5), "x mismatch"

    # Tiny-bag path (N < 16): pads rows up to one 16-row tile.
    x_tiny = jax.random.normal(kt, (5, L), jnp.float32)
    A_t, x_t = attn_net_gated(x_tiny, prepared, n_classes=n_classes, normalize=True)
    jax.block_until_ready((A_t, x_t))
    A_tr, x_tr = _reference(x_tiny, params, True)
    assert A_t.shape == (5, n_classes) and x_t.shape == (5, L)
    assert jnp.allclose(A_t, A_tr, atol=3e-2), "A (tiny) mismatch"
    assert jnp.allclose(x_t, x_tr, atol=1e-5), "x (tiny) mismatch"

    print("KERNEL_OK")
</pallas_src>

<mosaic_0001>
module attributes {stable_mosaic.version = 11 : i64} {
  func.func @_attn_gated_kernel(%arg0: i32, %arg1: memref<16x128xbf16, #tpu.memory_space<vmem>>, %arg2: memref<128x256xbf16, #tpu.memory_space<vmem>>, %arg3: memref<1x256xf32, #tpu.memory_space<vmem>>, %arg4: memref<128x128xbf16, #tpu.memory_space<vmem>>, %arg5: memref<1x128xf32, #tpu.memory_space<vmem>>, %arg6: memref<1x128xf32, #tpu.memory_space<vmem>>, %arg7: memref<1x128xf32, #tpu.memory_space<vmem>>, %arg8: memref<16x1xf32, #tpu.memory_space<vmem>>) attributes {dimension_semantics = [#tpu.dimension_semantics<parallel>], iteration_bounds = array<i64: 4>, scalar_prefetch = 0 : i64, scratch_operands = 0 : i64, tpu.core_type = #tpu.core_type<tc>, window_params = [{transform_indices = @transform_0, window_bounds = array<i64: 16, 128>}, {pipeline_mode = #tpu.pipeline_mode<synchronous>, transform_indices = @transform_1, window_bounds = array<i64: 128, 256>}, {pipeline_mode = #tpu.pipeline_mode<synchronous>, transform_indices = @transform_2, window_bounds = array<i64: 1, 256>}, {pipeline_mode = #tpu.pipeline_mode<synchronous>, transform_indices = @transform_3, window_bounds = array<i64: 128, 128>}, {pipeline_mode = #tpu.pipeline_mode<synchronous>, transform_indices = @transform_4, window_bounds = array<i64: 1, 128>}, {pipeline_mode = #tpu.pipeline_mode<synchronous>, transform_indices = @transform_5, window_bounds = array<i64: 1, 128>}, {pipeline_mode = #tpu.pipeline_mode<synchronous>, transform_indices = @transform_6, window_bounds = array<i64: 1, 128>}, {transform_indices = @transform_7, window_bounds = array<i64: 16, 1>}]} {
    %c0 = arith.constant 0 : index
    %c0_0 = arith.constant 0 : index
    %0 = vector.load %arg1[%c0, %c0_0] : memref<16x128xbf16, #tpu.memory_space<vmem>>, vector<16x128xbf16>
    %c0_1 = arith.constant 0 : index
    %c0_2 = arith.constant 0 : index
    %1 = vector.load %arg2[%c0_1, %c0_2] : memref<128x256xbf16, #tpu.memory_space<vmem>>, vector<128x256xbf16>
    %cst = arith.constant dense<0.000000e+00> : vector<16x256xf32>
    %2 = tpu.matmul %0, %1, %cst {dimension_numbers = #tpu.dot_dimension_numbers<[1], [0], [0], [1], [0, 0, 1, 1], [], []>} : vector<16x128xbf16>, vector<128x256xbf16>, vector<16x256xf32> -> vector<16x256xf32>
    %c0_3 = arith.constant 0 : index
    %c0_4 = arith.constant 0 : index
    %3 = vector.load %arg3[%c0_3, %c0_4] : memref<1x256xf32, #tpu.memory_space<vmem>>, vector<1x256xf32>
    %4 = vector.broadcast %3 : vector<1x256xf32> to vector<16x256xf32>
    %5 = arith.addf %2, %4 : vector<16x256xf32>
    %6 = math.tanh %5 : vector<16x256xf32>
    %7 = vector.extract_strided_slice %6 {offsets = [0, 0], sizes = [16, 128], strides = [1, 1]} : vector<16x256xf32> to vector<16x128xf32>
    %8 = vector.extract_strided_slice %6 {offsets = [0, 128], sizes = [16, 128], strides = [1, 1]} : vector<16x256xf32> to vector<16x128xf32>
    %cst_5 = arith.constant 1.000000e+00 : f32
    %9 = vector.broadcast %cst_5 : f32 to vector<16x128xf32>
    %10 = arith.addf %8, %9 : vector<16x128xf32>
    %11 = arith.mulf %7, %10 : vector<16x128xf32>
    %12 = arith.truncf %11 : vector<16x128xf32> to vector<16x128xbf16>
    %c0_6 = arith.constant 0 : index
    %c0_7 = arith.constant 0 : index
    %13 = vector.load %arg4[%c0_6, %c0_7] : memref<128x128xbf16, #tpu.memory_space<vmem>>, vector<128x128xbf16>
    %cst_8 = arith.constant dense<0.000000e+00> : vector<16x128xf32>
    %14 = tpu.matmul %12, %13, %cst_8 {dimension_numbers = #tpu.dot_dimension_numbers<[1], [0], [0], [1], [0, 0, 1, 1], [], []>} : vector<16x128xbf16>, vector<128x128xbf16>, vector<16x128xf32> -> vector<16x128xf32>
    %c0_9 = arith.constant 0 : index
    %c0_10 = arith.constant 0 : index
    %15 = vector.load %arg5[%c0_9, %c0_10] : memref<1x128xf32, #tpu.memory_space<vmem>>, vector<1x128xf32>
    %16 = vector.broadcast %15 : vector<1x128xf32> to vector<16x128xf32>
    %17 = arith.addf %14, %16 : vector<16x128xf32>
    %18 = vector.extract_strided_slice %17 {offsets = [0, 0], sizes = [16, 1], strides = [1, 1]} : vector<16x128xf32> to vector<16x1xf32>
    %c0_11 = arith.constant 0 : index
    %c0_12 = arith.constant 0 : index
    %19 = vector.load %arg8[%c0_11, %c0_12] : memref<16x1xf32, #tpu.memory_space<vmem>>, vector<16x1xf32>
    tpu.vector_store %arg8[%c0_11, %c0_12], %18 {strides = array<i32>} : memref<16x1xf32, #tpu.memory_space<vmem>>, vector<16x1xf32>,
    return
  }
  func.func @transform_0(%arg0: i32) -> (i32, i32) {
    %c0_i32 = arith.constant 0 : i32
    %c0_i32_0 = arith.constant 0 : i32
    return %arg0, %c0_i32 : i32, i32
  }
  func.func @transform_1(%arg0: i32) -> (i32, i32) {
    %c0_i32 = arith.constant 0 : i32
    %c0_i32_0 = arith.constant 0 : i32
    %c0_i32_1 = arith.constant 0 : i32
    return %c0_i32, %c0_i32_0 : i32, i32
  }
  func.func @transform_2(%arg0: i32) -> (i32, i32) {
    %c0_i32 = arith.constant 0 : i32
    %c0_i32_0 = arith.constant 0 : i32
    %c0_i32_1 = arith.constant 0 : i32
    return %c0_i32, %c0_i32_0 : i32, i32
  }
  func.func @transform_3(%arg0: i32) -> (i32, i32) {
    %c0_i32 = arith.constant 0 : i32
    %c0_i32_0 = arith.constant 0 : i32
    %c0_i32_1 = arith.constant 0 : i32
    return %c0_i32, %c0_i32_0 : i32, i32
  }
  func.func @transform_4(%arg0: i32) -> (i32, i32) {
    %c0_i32 = arith.constant 0 : i32
    %c0_i32_0 = arith.constant 0 : i32
    %c0_i32_1 = arith.constant 0 : i32
    return %c0_i32, %c0_i32_0 : i32, i32
  }
  func.func @transform_5(%arg0: i32) -> (i32, i32) {
    %c0_i32 = arith.constant 0 : i32
    %c0_i32_0 = arith.constant 0 : i32
    %c0_i32_1 = arith.constant 0 : i32
    return %c0_i32, %c0_i32_0 : i32, i32
  }
  func.func @transform_6(%arg0: i32) -> (i32, i32) {
    %c0_i32 = arith.constant 0 : i32
    %c0_i32_0 = arith.constant 0 : i32
    %c0_i32_1 = arith.constant 0 : i32
    return %c0_i32, %c0_i32_0 : i32, i32
  }
  func.func @transform_7(%arg0: i32) -> (i32, i32) {
    %c0_i32 = arith.constant 0 : i32
    %c0_i32_0 = arith.constant 0 : i32
    return %arg0, %c0_i32 : i32, i32
  }
}

</mosaic_0001>

<llo_original>
// kernel: tpu_custom_call.1
$region0: #{tpu_custom_call.1}
  #allocation0 [shape = 'u32[]', space=smem, size = 0x4, offset = 0x4, fixed_abs, tag = 'smem constant byte address 0x4 - core index']
  #allocation1 [shape = 'u32[72,128]{1,0:T(1,128)}', space=vmem, size = 0x9000, scoped, tag = 'internal scratch']
  %s0 = inlined_call_operand.hbm [shape: bf16[50,128], index: 0, kind: input, shape index: {}]
  %s1 = inlined_call_operand.hbm [shape: bf16[128,256], index: 1, kind: input, shape index: {}]
  %s2 = inlined_call_operand.hbm [shape: f32[1,256], index: 2, kind: input, shape index: {}]
  %s3 = inlined_call_operand.hbm [shape: bf16[128,128], index: 3, kind: input, shape index: {}]
  %s4 = inlined_call_operand.vmem [shape: f32[1,128], index: 4, kind: input, shape index: {}]
  %s5 = inlined_call_operand.vmem [shape: f32[1,128], index: 5, kind: input, shape index: {}]
  %s6 = inlined_call_operand.vmem [shape: f32[1,128], index: 6, kind: input, shape index: {}]
  %s7 = inlined_call_operand.vmem [shape: f32[50,1], index: 7, kind: output, shape index: {}]
  %s8 = sld [smem:[#allocation0]]
  $region125: #{tpu_custom_call.1} parent=0
    _
  %s10 = ssub.s32 1, %s8
  %s11 = scalar_select 0, %s10, %s8
  $region1: #{tpu_custom_call.1} parent=0
    #allocation2 [shape = 'u8[8192]{0}', space=vmem, size = 0x2000, scoped, tag = 'input window, operand 0']
    #allocation3 [shape = 's32[2]{0}', space=sflag, size = 0x8, scoped, tag = 'scoped memory for tpu_custom_call.1']
    #allocation4 [shape = 'u8[65536]{0}', space=vmem, size = 0x10000, scoped, tag = 'input window, operand 1, single buffered']
    #allocation5 [shape = 's32[1]{0}', space=sflag, size = 0x4, scoped, tag = 'scoped memory for tpu_custom_call.1']
    #allocation6 [shape = 'u8[1024]{0}', space=vmem, size = 0x400, scoped, tag = 'input window, operand 2, single buffered']
    #allocation7 [shape = 'u8[32768]{0}', space=vmem, size = 0x8000, scoped, tag = 'input window, operand 3, single buffered']
    #allocation8 [shape = 's32[1]{0}', space=sflag, size = 0x4, scoped, tag = 'scoped memory for tpu_custom_call.1']
    #allocation9 [shape = 'u8[16384]{0}', space=vmem, size = 0x4000, scoped, tag = 'output window, operand 0']
    %12 = vsyncpa [#allocation3], 0
    %s13 = scalar_lea.sflag [#allocation3], 1
    %14 = vsyncpa %s13, 0
    %15 = vsyncpa [#allocation5], 0
    %16 = vsyncpa [#allocation8], 0
    loop: start=0, step=1, limit=6
    $region2: #{tpu_custom_call.1} parent=1 // loop_pre_header
      _
    $region3: #{tpu_custom_call.1} parent=1 // loop_header
      %s18 = sphi 0, %s22
      %p19 = scmp.ge.s32.totalorder %s18, 6
      %s28 = sphi 0, %s30
      %s31 = sphi 0, %s28
      %s32 = sphi 0, %s31
      %s48 = sphi 0, %s32
      %s52 = sphi 0, %s52
      %s54 = sphi 0, %s52
      %s55 = sphi 0, %s54
      %s69 = sphi 0, %s55
      %s73 = sphi 0, %s73
      %s75 = sphi 0, %s73
      %s76 = sphi 0, %s75
      %s90 = sphi 0, %s76
      %s94 = sphi 0, %s94
      %s96 = sphi 0, %s94
      %s97 = sphi 0, %s96
      %s111 = sphi 0, %s97
      %s115 = sphi 0, %s115
      %s117 = sphi 0, %s115
      %s118 = sphi 0, %s117
      %s132 = sphi 0, %s118
      %s136 = sphi 0, %s136
      %s138 = sphi 0, %s136
      %s139 = sphi 0, %s138
      %s153 = sphi 0, %s139
      %s157 = sphi 0, %s157
      %s159 = sphi 0, %s157
      %s160 = sphi 0, %s159
      %s174 = sphi 0, %s160
      %s180 = sphi 0, %s182
      %s183 = sphi 0, %s180
      %s184 = sphi 0, %s183
      %s200 = sphi 0, %s184
    $region4: #{tpu_custom_call.1} parent=1 // loop_header_branch
      %21 = sbr.rel (%p19) target = $region8
    $region5: #{tpu_custom_call.1} parent=1 // loop_body
      %s23 = ssub.s32 %s18, 1
      %s24 = ssub.s32 %s18, 2
      %s25 = sadd.s32 %s18, 1
      %s26 = ssub.s32 %s18, %s25
      %p27 = scmp.eq.s32.totalorder %s26, 0
      %s29 = sadd.s32 %s28, 1
      %s30 = scalar_select %p27, %s28, %s29
      %p33 = pneg %p27
      %p34 = scmp.eq.s32.totalorder %s18, 3
      %p35 = por %p33, %p34
      %p36 = scmp.ne.s32.totalorder %s28, %s31
      %p37 = scmp.eq.s32.totalorder %s18, 0
      %p38 = por %p36, %p37
      %p39 = scmp.ne.s32.totalorder %s28, %s31
      %p40 = scmp.eq.s32.totalorder %s23, 3
      %p41 = por %p39, %p40
      %p42 = scmp.ne.s32.totalorder %s31, %s32
      %p43 = scmp.eq.s32.totalorder %s23, 0
      %p44 = por %p42, %p43
      %p45 = scmp.ne.s32.totalorder %s31, %s32
      %p46 = scmp.eq.s32.totalorder %s24, 3
      %p47 = por %p45, %p46
      %p49 = scmp.ne.s32.totalorder %s32, %s48
      %p50 = scmp.eq.s32.totalorder %s24, 0
      %p51 = por %p49, %p50
      %s53 = sadd.s32 %s52, 1
      %p56 = scmp.eq.s32.totalorder %s18, 3
      %p57 = scmp.ne.s32.totalorder %s52, %s54
      %p58 = scmp.eq.s32.totalorder %s18, 0
      %p59 = por %p57, %p58
      %p60 = scmp.ne.s32.totalorder %s52, %s54
      %p61 = scmp.eq.s32.totalorder %s23, 3
      %p62 = por %p60, %p61
      %p63 = scmp.ne.s32.totalorder %s54, %s55
      %p64 = scmp.eq.s32.totalorder %s23, 0
      %p65 = por %p63, %p64
      %p66 = scmp.ne.s32.totalorder %s54, %s55
      %p67 = scmp.eq.s32.totalorder %s24, 3
      %p68 = por %p66, %p67
      %p70 = scmp.ne.s32.totalorder %s55, %s69
      %p71 = scmp.eq.s32.totalorder %s24, 0
      %p72 = por %p70, %p71
      %s74 = sadd.s32 %s73, 1
      %p77 = scmp.eq.s32.totalorder %s18, 3
      %p78 = scmp.ne.s32.totalorder %s73, %s75
      %p79 = scmp.eq.s32.totalorder %s18, 0
      %p80 = por %p78, %p79
      %p81 = scmp.ne.s32.totalorder %s73, %s75
      %p82 = scmp.eq.s32.totalorder %s23, 3
      %p83 = por %p81, %p82
      %p84 = scmp.ne.s32.totalorder %s75, %s76
      %p85 = scmp.eq.s32.totalorder %s23, 0
      %p86 = por %p84, %p85
      %p87 = scmp.ne.s32.totalorder %s75, %s76
      %p88 = scmp.eq.s32.totalorder %s24, 3
      %p89 = por %p87, %p88
      %p91 = scmp.ne.s32.totalorder %s76, %s90
      %p92 = scmp.eq.s32.totalorder %s24, 0
      %p93 = por %p91, %p92
      %s95 = sadd.s32 %s94, 1
      %p98 = scmp.eq.s32.totalorder %s18, 3
      %p99 = scmp.ne.s32.totalorder %s94, %s96
      %p100 = scmp.eq.s32.totalorder %s18, 0
      %p101 = por %p99, %p100
      %p102 = scmp.ne.s32.totalorder %s94, %s96
      %p103 = scmp.eq.s32.totalorder %s23, 3
      %p104 = por %p102, %p103
      %p105 = scmp.ne.s32.totalorder %s96, %s97
      %p106 = scmp.eq.s32.totalorder %s23, 0
      %p107 = por %p105, %p106
      %p108 = scmp.ne.s32.totalorder %s96, %s97
      %p109 = scmp.eq.s32.totalorder %s24, 3
      %p110 = por %p108, %p109
      %p112 = scmp.ne.s32.totalorder %s97, %s111
      %p113 = scmp.eq.s32.totalorder %s24, 0
      %p114 = por %p112, %p113
      %s116 = sadd.s32 %s115, 1
      %p119 = scmp.eq.s32.totalorder %s18, 3
      %p120 = scmp.ne.s32.totalorder %s115, %s117
      %p121 = scmp.eq.s32.totalorder %s18, 0
      %p122 = por %p120, %p121
      %p123 = scmp.ne.s32.totalorder %s115, %s117
      %p124 = scmp.eq.s32.totalorder %s23, 3
      %p125 = por %p123, %p124
      %p126 = scmp.ne.s32.totalorder %s117, %s118
      %p127 = scmp.eq.s32.totalorder %s23, 0
      %p128 = por %p126, %p127
      %p129 = scmp.ne.s32.totalorder %s117, %s118
      %p130 = scmp.eq.s32.totalorder %s24, 3
      %p131 = por %p129, %p130
      %p133 = scmp.ne.s32.totalorder %s118, %s132
      %p134 = scmp.eq.s32.totalorder %s24, 0
      %p135 = por %p133, %p134
      %s137 = sadd.s32 %s136, 1
      %p140 = scmp.eq.s32.totalorder %s18, 3
      %p141 = scmp.ne.s32.totalorder %s136, %s138
      %p142 = scmp.eq.s32.totalorder %s18, 0
      %p143 = por %p141, %p142
      %p144 = scmp.ne.s32.totalorder %s136, %s138
      %p145 = scmp.eq.s32.totalorder %s23, 3
      %p146 = por %p144, %p145
      %p147 = scmp.ne.s32.totalorder %s138, %s139
      %p148 = scmp.eq.s32.totalorder %s23, 0
      %p149 = por %p147, %p148
      %p150 = scmp.ne.s32.totalorder %s138, %s139
      %p151 = scmp.eq.s32.totalorder %s24, 3
      %p152 = por %p150, %p151
      %p154 = scmp.ne.s32.totalorder %s139, %s153
      %p155 = scmp.eq.s32.totalorder %s24, 0
      %p156 = por %p154, %p155
      %s158 = sadd.s32 %s157, 1
      %p161 = scmp.eq.s32.totalorder %s18, 3
      %p162 = scmp.ne.s32.totalorder %s157, %s159
      %p163 = scmp.eq.s32.totalorder %s18, 0
      %p164 = por %p162, %p163
      %p165 = scmp.ne.s32.totalorder %s157, %s159
      %p166 = scmp.eq.s32.totalorder %s23, 3
      %p167 = por %p165, %p166
      %p168 = scmp.ne.s32.totalorder %s159, %s160
      %p169 = scmp.eq.s32.totalorder %s23, 0
      %p170 = por %p168, %p169
      %p171 = scmp.ne.s32.totalorder %s159, %s160
      %p172 = scmp.eq.s32.totalorder %s24, 3
      %p173 = por %p171, %p172
      %p175 = scmp.ne.s32.totalorder %s160, %s174
      %p176 = scmp.eq.s32.totalorder %s24, 0
      %p177 = por %p175, %p176
      %s178 = ssub.s32 %s18, %s25
      %p179 = scmp.eq.s32.totalorder %s178, 0
      %s181 = sadd.s32 %s180, 1
      %s182 = scalar_select %p179, %s180, %s181
      %p185 = pneg %p179
      %p186 = scmp.eq.s32.totalorder %s18, 3
      %p187 = por %p185, %p186
      %p188 = scmp.ne.s32.totalorder %s180, %s183
      %p189 = scmp.eq.s32.totalorder %s18, 0
      %p190 = por %p188, %p189
      %p191 = scmp.ne.s32.totalorder %s180, %s183
      %p192 = scmp.eq.s32.totalorder %s23, 3
      %p193 = por %p191, %p192
      %p194 = scmp.ne.s32.totalorder %s183, %s184
      %p195 = scmp.eq.s32.totalorder %s23, 0
      %p196 = por %p194, %p195
      %p197 = scmp.ne.s32.totalorder %s183, %s184
      %p198 = scmp.eq.s32.totalorder %s24, 3
      %p199 = por %p197, %p198
      %p201 = scmp.ne.s32.totalorder %s184, %s200
      %p202 = scmp.eq.s32.totalorder %s24, 0
      %p203 = por %p201, %p202
      %p204 = scmp.le.s32.totalorder 1, %s18
      %p205 = scmp.lt.s32.totalorder %s18, 5
      %p206 = pnand %p204, %p205
      %p207 = pneg %p206
      // Predicated region
      $region9: #{tpu_custom_call.1} parent=5 // pred_check
        _
      $region10: #{tpu_custom_call.1} parent=5 // pred_check_branch
        %209 = sbr.rel (%p206) target = $region12
      $region11: #{tpu_custom_call.1} parent=5 // pred_region
        %s210 = ssub.s32 %s18, 1
        // Predicated region
        $region13: #{tpu_custom_call.1} parent=11 // pred_check
          %p211 = pneg %p65
        $region14: #{tpu_custom_call.1} parent=11 // pred_check_branch
          %213 = sbr.rel (%p211) target = $region16
        $region15: #{tpu_custom_call.1} parent=11 // pred_region
          %215 = vsyncadd [#allocation5], 0
          %s216 = sshll.u32 %s1, 4
          %s217 = int_to_ptr.hbm [resolvable:$true] %s216
          %s218 = sshll.u32 [#allocation4], 4
          %s219 = int_to_ptr.vmem [resolvable:$true] %s218
          %224 = dma.hbm_to_vmem [thread:$0]  %s217, 2048, %s219, [#allocation5], 128, 128, 8
        $region16: #{tpu_custom_call.1} parent=11 // pred_fallthru
          _
        // Predicated region
        $region17: #{tpu_custom_call.1} parent=11 // pred_check
          %p225 = pneg %p86
        $region18: #{tpu_custom_call.1} parent=11 // pred_check_branch
          %227 = sbr.rel (%p225) target = $region20
        $region19: #{tpu_custom_call.1} parent=11 // pred_region
          %229 = vsyncadd [#allocation5], 0
          %s231 = sshll.u32 %s2, 4
          %s232 = int_to_ptr.hbm [resolvable:$true] %s231
          %s233 = sshll.u32 [#allocation6], 4
          %s234 = int_to_ptr.vmem [resolvable:$true] %s233
          %236 = dma.hbm_to_vmem [thread:$0]  %s232, 32, %s234, [#allocation5]
        $region20: #{tpu_custom_call.1} parent=11 // pred_fallthru
          _
        // Predicated region
        $region21: #{tpu_custom_call.1} parent=11 // pred_check
          %p237 = pneg %p107
        $region22: #{tpu_custom_call.1} parent=11 // pred_check_branch
          %239 = sbr.rel (%p237) target = $region24
        $region23: #{tpu_custom_call.1} parent=11 // pred_region
          %241 = vsyncadd [#allocation8], 0
          %s242 = sshll.u32 %s3, 4
          %s243 = int_to_ptr.hbm [resolvable:$true] %s242
          %s244 = sshll.u32 [#allocation7], 4
          %s245 = int_to_ptr.vmem [resolvable:$true] %s244
          %250 = dma.hbm_to_vmem [thread:$0]  %s243, 1024, %s245, [#allocation8], 64, 64, 4
        $region24: #{tpu_custom_call.1} parent=11 // pred_fallthru
          _
        // Predicated region
        $region25: #{tpu_custom_call.1} parent=11 // pred_check
          %p251 = pneg %p128
        $region26: #{tpu_custom_call.1} parent=11 // pred_check_branch
          %253 = sbr.rel (%p251) target = $region28
        $region27: #{tpu_custom_call.1} parent=11 // pred_region
          _
        $region28: #{tpu_custom_call.1} parent=11 // pred_fallthru
          _
        // Predicated region
        $region29: #{tpu_custom_call.1} parent=11 // pred_check
          %p254 = pneg %p149
        $region30: #{tpu_custom_call.1} parent=11 // pred_check_branch
          %256 = sbr.rel (%p254) target = $region32
        $region31: #{tpu_custom_call.1} parent=11 // pred_region
          _
        $region32: #{tpu_custom_call.1} parent=11 // pred_fallthru
          _
        // Predicated region
        $region33: #{tpu_custom_call.1} parent=11 // pred_check
          %p257 = pneg %p170
        $region34: #{tpu_custom_call.1} parent=11 // pred_check_branch
          %259 = sbr.rel (%p257) target = $region36
        $region35: #{tpu_custom_call.1} parent=11 // pred_region
          _
        $region36: #{tpu_custom_call.1} parent=11 // pred_fallthru
          _
      $region12: #{tpu_custom_call.1} parent=5 // pred_fallthru
        _
      %p260 = scmp.lt.s32.totalorder %s18, 4
      // Predicated region
      $region37: #{tpu_custom_call.1} parent=5 // pred_check
        %p261 = pneg %p260
      $region38: #{tpu_custom_call.1} parent=5 // pred_check_branch
        %263 = sbr.rel (%p261) target = $region40
      $region39: #{tpu_custom_call.1} parent=5 // pred_region
        // Predicated region
        $region41: #{tpu_custom_call.1} parent=39 // pred_check
          %p264 = pneg %p38
        $region42: #{tpu_custom_call.1} parent=39 // pred_check_branch
          %266 = sbr.rel (%p264) target = $region44
        $region43: #{tpu_custom_call.1} parent=39 // pred_region
          %s267 = sand.u32 %s28, 1
          %s268 = scalar_lea.sflag [#allocation3], %s267
          %s269 = sand.u32 %s28, 1
          %s270 = smul.addr %s269, 8
          %s271 = scalar_lea.vmem [#allocation2], %s270
          %s272 = smul.u32 2, %s18
          %s273 = ssub.s32 7, %s272
          %p274 = scmp.lt.s32.totalorder %s273, 2
          %s275 = scalar_select %p274, %s273, 2
          %s276 = smul.u32 4, %s275
          %s277 = ssub.s32 8, %s276
          %s278 = sshll.u32 %s277, 4
          %279 = vsyncadd %s268, %s278
          %p280 = scmp.ne.s32.totalorder 0, %s276
          %s281 = smul.addr %s272, 4
          %s282 = scalar_lea.hbm %s0, %s281
          %s283 = smul.u32 4, %s275
          %s284 = sshll.u32 %s282, 4
          %s285 = int_to_ptr.hbm [resolvable:$true] %s284
          %s286 = sshll.u32 %s271, 4
          %s287 = int_to_ptr.vmem [resolvable:$true] %s286
          %s288 = sshll.u32 %s283, 4
          %292 = dma.hbm_to_vmem [thread:$0]  (%p280), %s285, %s288, %s287, %s268, 64, 64, 4
        $region44: #{tpu_custom_call.1} parent=39 // pred_fallthru
          _
      $region40: #{tpu_custom_call.1} parent=5 // pred_fallthru
        _
      %p293 = scmp.le.s32.totalorder 1, %s18
      %p294 = scmp.lt.s32.totalorder %s18, 5
      %p295 = pnand %p293, %p294
      %p296 = pneg %p295
      // Predicated region
      $region45: #{tpu_custom_call.1} parent=5 // pred_check
        _
      $region46: #{tpu_custom_call.1} parent=5 // pred_check_branch
        %298 = sbr.rel (%p295) target = $region48
      $region47: #{tpu_custom_call.1} parent=5 // pred_region
        %s299 = ssub.s32 %s18, 1
        %s300 = sand.u32 %s31, 1
        %s301 = scalar_lea.sflag [#allocation3], %s300
        %s302 = sand.u32 %s31, 1
        %s303 = smul.addr %s302, 8
        %s304 = scalar_lea.vmem [#allocation2], %s303
        // Predicated region
        $region49: #{tpu_custom_call.1} parent=47 // pred_check
          %p305 = pneg %p44
        $region50: #{tpu_custom_call.1} parent=47 // pred_check_branch
          %307 = sbr.rel (%p305) target = $region52
        $region51: #{tpu_custom_call.1} parent=47 // pred_region
          %309 = dma.done %s301, 128
        $region52: #{tpu_custom_call.1} parent=47 // pred_fallthru
          _
        // Predicated region
        $region53: #{tpu_custom_call.1} parent=47 // pred_check
          %p310 = pneg %p65
        $region54: #{tpu_custom_call.1} parent=47 // pred_check_branch
          %312 = sbr.rel (%p310) target = $region56
        $region55: #{tpu_custom_call.1} parent=47 // pred_region
          %314 = dma.done [#allocation5], 2048
        $region56: #{tpu_custom_call.1} parent=47 // pred_fallthru
          _
        // Predicated region
        $region57: #{tpu_custom_call.1} parent=47 // pred_check
          %p315 = pneg %p86
        $region58: #{tpu_custom_call.1} parent=47 // pred_check_branch
          %317 = sbr.rel (%p315) target = $region60
        $region59: #{tpu_custom_call.1} parent=47 // pred_region
          %319 = dma.done [#allocation5], 32
        $region60: #{tpu_custom_call.1} parent=47 // pred_fallthru
          _
        // Predicated region
        $region61: #{tpu_custom_call.1} parent=47 // pred_check
          %p320 = pneg %p107
        $region62: #{tpu_custom_call.1} parent=47 // pred_check_branch
          %322 = sbr.rel (%p320) target = $region64
        $region63: #{tpu_custom_call.1} parent=47 // pred_region
          %324 = dma.done [#allocation8], 1024
        $region64: #{tpu_custom_call.1} parent=47 // pred_fallthru
          _
        %s325 = sand.u32 %s31, 1
        %s326 = scalar_lea.sflag [#allocation3], %s325
        %s327 = sand.u32 %s31, 1
        %s328 = smul.addr %s327, 8
        %s329 = scalar_lea.vmem [#allocation2], %s328
        %p330 = pneg %p44
        %p331 = pneg %p41
        %p332 = pneg %p65
        %p333 = pneg %p62
        %p334 = pneg %p86
        %p335 = pneg %p83
        %p336 = pneg %p107
        %p337 = pneg %p104
        %p338 = pneg %p128
        %p339 = pneg %p125
        %p340 = pneg %p149
        %p341 = pneg %p146
        %p342 = pneg %p170
        %p343 = pneg %p167
        %p344 = pneg %p196
        %p345 = pneg %p193
        %s346 = sand.u32 %s183, 1
        %s347 = sand.u32 %s183, 1
        %s348 = smul.addr %s347, 16
        %s349 = scalar_lea.vmem [#allocation9], %s348
        %s350 = smul.u32 2, %s23
        %s351 = ssub.s32 7, %s350
        %p352 = scmp.lt.s32.totalorder %s351, 2
        %s353 = scalar_select %p352, %s351, 2
        %s354 = smul.u32 4, %s353
        %s355 = smul.u32 2, %s23
        %s356 = ssub.s32 7, %s355
        %p357 = scmp.lt.s32.totalorder %s356, 2
        %s358 = scalar_select %p357, %s356, 2
        %s359 = smul.u32 8, %s358
        %v360 = vld [vmem:[%s304] sm:$0xf]
        %v361 = vld [vmem:[%s304 + $0x4] sm:$0xf]
        %v362 = vld [vmem:[#allocation4] sm:$0xff]
        %v363 = vld [vmem:[#allocation4 + $0x8] sm:$0xff]
        %v364 = vld [vmem:[#allocation4 + $0x10] sm:$0xff]
        %v365 = vld [vmem:[#allocation4 + $0x18] sm:$0xff]
        %v366 = vld [vmem:[#allocation4 + $0x20] sm:$0xff]
        %v367 = vld [vmem:[#allocation4 + $0x28] sm:$0xff]
        %v368 = vld [vmem:[#allocation4 + $0x30] sm:$0xff]
        %v369 = vld [vmem:[#allocation4 + $0x38] sm:$0xff]
        %v370 = vld [vmem:[#allocation4 + $0x40] sm:$0xff]
        %v371 = vld [vmem:[#allocation4 + $0x48] sm:$0xff]
        %v372 = vld [vmem:[#allocation4 + $0x50] sm:$0xff]
        %v373 = vld [vmem:[#allocation4 + $0x58] sm:$0xff]
        %v374 = vld [vmem:[#allocation4 + $0x60] sm:$0xff]
        %v375 = vld [vmem:[#allocation4 + $0x68] sm:$0xff]
        %v376 = vld [vmem:[#allocation4 + $0x70] sm:$0xff]
        %v377 = vld [vmem:[#allocation4 + $0x78] sm:$0xff]
        %v378 = vld [vmem:[#allocation6] sm:$0x3]
        %v380 = vperm.slane %v378, 0
        %v381 = vperm.slane %v378, 1
        %v386 = vunpack.c.l.b16 %v360
        %v387 = vunpack.c.l.b16 %v361
        %v388 = vpack.c.b16 %v387, %v386
        %v406 = vunpack.c.l.b16 %v362
        %v407 = vunpack.c.h.b16 %v362
        %v408 = vunpack.c.l.b16 %v363
        %v409 = vunpack.c.h.b16 %v363
        %v410 = vunpack.c.l.b16 %v364
        %v411 = vunpack.c.h.b16 %v364
        %v412 = vunpack.c.l.b16 %v365
        %v413 = vunpack.c.h.b16 %v365
        %v414 = vunpack.c.l.b16 %v366
        %v415 = vunpack.c.h.b16 %v366
        %v416 = vunpack.c.l.b16 %v367
        %v417 = vunpack.c.h.b16 %v367
        %v418 = vunpack.c.l.b16 %v368
        %v419 = vunpack.c.h.b16 %v368
        %v420 = vunpack.c.l.b16 %v369
        %v421 = vunpack.c.h.b16 %v369
        %v422 = vunpack.c.l.b16 %v370
        %v423 = vunpack.c.h.b16 %v370
        %v424 = vunpack.c.l.b16 %v371
        %v425 = vunpack.c.h.b16 %v371
        %v426 = vunpack.c.l.b16 %v372
        %v427 = vunpack.c.h.b16 %v372
        %v428 = vunpack.c.l.b16 %v373
        %v429 = vunpack.c.h.b16 %v373
        %v430 = vunpack.c.l.b16 %v374
        %v431 = vunpack.c.h.b16 %v374
        %v432 = vunpack.c.l.b16 %v375
        %v433 = vunpack.c.h.b16 %v375
        %v434 = vunpack.c.l.b16 %v376
        %v435 = vunpack.c.h.b16 %v376
        %v436 = vunpack.c.l.b16 %v377
        %v437 = vunpack.c.h.b16 %v377
        %v438 = vpack.c.b16 %v408, %v406
        %v439 = vpack.c.b16 %v409, %v407
        %v440 = vpack.c.b16 %v412, %v410
        %v441 = vpack.c.b16 %v413, %v411
        %v442 = vpack.c.b16 %v416, %v414
        %v443 = vpack.c.b16 %v417, %v415
        %v444 = vpack.c.b16 %v420, %v418
        %v445 = vpack.c.b16 %v421, %v419
        %v446 = vpack.c.b16 %v424, %v422
        %v447 = vpack.c.b16 %v425, %v423
        %v448 = vpack.c.b16 %v428, %v426
        %v449 = vpack.c.b16 %v429, %v427
        %v450 = vpack.c.b16 %v432, %v430
        %v451 = vpack.c.b16 %v433, %v431
        %v452 = vpack.c.b16 %v436, %v434
        %v453 = vpack.c.b16 %v437, %v435
        %470 = vmatpush.bf16.msra.mxu0 %v452
        %471 = vmatpush.bf16.msra.mxu0 %v450
        %472 = vmatpush.bf16.msra.mxu0 %v448
        %473 = vmatpush.bf16.msra.mxu0 %v446
        %474 = vmatpush.bf16.msra.mxu0 %v444
        %475 = vmatpush.bf16.msra.mxu0 %v442
        %476 = vmatpush.bf16.msra.mxu0 %v440
        %477 = vmatpush.bf16.msra.mxu0 %v438
        %478 = vmatmul.bf16.gmra.mxu0 %v388
        %v479 = vpop.f32.mrf.mxu0
        %v480 = vadd.f32 %v380, %v479
        %v481 = vpop.f32.mrf.mxu0
        %v482 = vadd.f32 %v380, %v481
        %483 = vdwg.mxu0
        %484 = vmatpush.bf16.msra.mxu0 %v453
        %485 = vmatpush.bf16.msra.mxu0 %v451
        %486 = vmatpush.bf16.msra.mxu0 %v449
        %487 = vmatpush.bf16.msra.mxu0 %v447
        %488 = vmatpush.bf16.msra.mxu0 %v445
        %489 = vmatpush.bf16.msra.mxu0 %v443
        %490 = vmatpush.bf16.msra.mxu0 %v441
        %491 = vmatpush.bf16.msra.mxu0 %v439
        %492 = vmatmul.bf16.gmra.mxu0 %v388
        %v493 = vpop.f32.mrf.mxu0
        %v494 = vadd.f32 %v381, %v493
        %v495 = vpop.f32.mrf.mxu0
        %v496 = vadd.f32 %v381, %v495
        %497 = vdwg.mxu0
        %v498 = vtanh.pop %v480
        %v499 = vtanh.pop %v494
        %v500 = vtanh.pop %v482
        %v501 = vtanh.pop %v496
        %v502 = vadd.f32 %v499, 1.0
        %v503 = vadd.f32 %v501, 1.0
        %v504 = vmul.f32 %v498, %v502
        %v505 = vmul.f32 %v500, %v503
        %v506 = vpack.c.bf16 %v505, %v504
        %v507 = vld [vmem:[#allocation7] sm:$0xf]
        %v508 = vld [vmem:[#allocation7 + $0x4] sm:$0xf]
        %v509 = vld [vmem:[#allocation7 + $0x8] sm:$0xf]
        %v510 = vld [vmem:[#allocation7 + $0xc] sm:$0xf]
        %v511 = vld [vmem:[#allocation7 + $0x10] sm:$0xf]
        %v512 = vld [vmem:[#allocation7 + $0x14] sm:$0xf]
        %v513 = vld [vmem:[#allocation7 + $0x18] sm:$0xf]
        %v514 = vld [vmem:[#allocation7 + $0x1c] sm:$0xf]
        %v515 = vld [vmem:[#allocation7 + $0x20] sm:$0xf]
        %v516 = vld [vmem:[#allocation7 + $0x24] sm:$0xf]
        %v517 = vld [vmem:[#allocation7 + $0x28] sm:$0xf]
        %v518 = vld [vmem:[#allocation7 + $0x2c] sm:$0xf]
        %v519 = vld [vmem:[#allocation7 + $0x30] sm:$0xf]
        %v520 = vld [vmem:[#allocation7 + $0x34] sm:$0xf]
        %v521 = vld [vmem:[#allocation7 + $0x38] sm:$0xf]
        %v522 = vld [vmem:[#allocation7 + $0x3c] sm:$0xf]
        %v523 = vld [vmem:[%s4] sm:$0x1]
        %v525 = vperm.slane %v523, 0
        %v543 = vunpack.c.l.b16 %v507
        %v544 = vunpack.c.l.b16 %v508
        %v545 = vunpack.c.l.b16 %v509
        %v546 = vunpack.c.l.b16 %v510
        %v547 = vunpack.c.l.b16 %v511
        %v548 = vunpack.c.l.b16 %v512
        %v549 = vunpack.c.l.b16 %v513
        %v550 = vunpack.c.l.b16 %v514
        %v551 = vunpack.c.l.b16 %v515
        %v552 = vunpack.c.l.b16 %v516
        %v553 = vunpack.c.l.b16 %v517
        %v554 = vunpack.c.l.b16 %v518
        %v555 = vunpack.c.l.b16 %v519
        %v556 = vunpack.c.l.b16 %v520
        %v557 = vunpack.c.l.b16 %v521
        %v558 = vunpack.c.l.b16 %v522
        %v559 = vpack.c.b16 %v544, %v543
        %v560 = vpack.c.b16 %v546, %v545
        %v561 = vpack.c.b16 %v548, %v547
        %v562 = vpack.c.b16 %v550, %v549
        %v563 = vpack.c.b16 %v552, %v551
        %v564 = vpack.c.b16 %v554, %v553
        %v565 = vpack.c.b16 %v556, %v555
        %v566 = vpack.c.b16 %v558, %v557
        %575 = vmatpush.bf16.msra.mxu0 %v566
        %576 = vmatpush.bf16.msra.mxu0 %v565
        %577 = vmatpush.bf16.msra.mxu0 %v564
        %578 = vmatpush.bf16.msra.mxu0 %v563
        %579 = vmatpush.bf16.msra.mxu0 %v562
        %580 = vmatpush.bf16.msra.mxu0 %v561
        %581 = vmatpush.bf16.msra.mxu0 %v560
        %582 = vmatpush.bf16.msra.mxu0 %v559
        %583 = vmatmul.bf16.gmra.mxu0 %v506
        %v584 = vpop.f32.mrf.mxu0
        %v585 = vadd.f32 %v525, %v584
        %v586 = vpop.f32.mrf.mxu0
        %v587 = vadd.f32 %v525, %v586
        %588 = vdwg.mxu0
        %vm589 = vcmask 7168
        %590 = vst.msk [vmem:[%s349] sm:$0xff] %vm589, %v585
        %591 = vst.msk [vmem:[%s349 + $0x8] sm:$0xff] %vm589, %v587
        %s592 = sand.u32 %s183, 1
        %s593 = sand.u32 %s183, 1
        %s594 = smul.addr %s593, 16
        %s595 = scalar_lea.vmem [#allocation9], %s594
        // Predicated region
        $region65: #{tpu_custom_call.1} parent=47 // pred_check
          %p596 = pneg %p193
        $region66: #{tpu_custom_call.1} parent=47 // pred_check_branch
          %598 = sbr.rel (%p596) target = $region68
        $region67: #{tpu_custom_call.1} parent=47 // pred_region
          %s599 = smul.u32 2, %s23
          %s600 = ssub.s32 7, %s599
          %p601 = scmp.lt.s32.totalorder %s600, 2
          %s602 = scalar_select %p601, %s600, 2
          %s603 = smul.u32 8, %s602
          %p604 = scmp.ne.s32.totalorder 0, %s603
          %s605 = smul.addr %s599, 8
          %s606 = scalar_lea.vmem %s7, %s605
          // Predicated region
          $region69: #{tpu_custom_call.1} parent=67 // pred_check
            %p607 = pneg %p604
          $region70: #{tpu_custom_call.1} parent=67 // pred_check_branch
            %609 = sbr.rel (%p607) target = $region72
          $region71: #{tpu_custom_call.1} parent=67 // pred_region
            // Predicated region
            $region73: #{tpu_custom_call.1} parent=71 // pred_check
              _
            $region74: #{tpu_custom_call.1} parent=71 // pred_check_branch
              %611 = sbr.rel (0) target = $region76
            $region75: #{tpu_custom_call.1} parent=71 // pred_region
              // Predicated region
              $region95: #{tpu_custom_call.1} parent=75 // pred_check
                _
              $region96: #{tpu_custom_call.1} parent=75 // pred_check_branch
                %663 = sbr.rel (0) target = $region98
              $region97: #{tpu_custom_call.1} parent=75 // pred_region
                %s664 = sshrl.u32 %s602, 1
                // While loop
                $region99: #{tpu_custom_call.1} parent=97 // loop_pre_header
                  _
                $region100: #{tpu_custom_call.1} parent=97 // loop_header
                  %s666 = sphi 0, %s668
                  %p667 = scmp.ge.s32.totalorder %s666, %s664
                  %s671 = sphi 0, %s680
                  %s672 = sphi %s595, %s683
                  %s673 = sphi %s606, %s684
                $region101: #{tpu_custom_call.1} parent=97 // loop_header_branch
                  %670 = sbr.rel (%p667) target = $region105
                $region102: #{tpu_custom_call.1} parent=97 // loop_body
                  %v674 = vld [vmem:[%s672] sm:$0xff]
                  %675 = vst [vmem:[%s673] sm:$0xff] %v674
                  %v676 = vld [vmem:[%s672 + $0x8] sm:$0xff]
                  %677 = vst [vmem:[%s673 + $0x8] sm:$0xff] %v676
                  %s678 = sadd.s32 1, %s671
                  %p679 = scmp.ge.s32.totalorder %s678, %s664
                  %s680 = scalar_select %p679, 0, %s678
                  %s681 = smul.u32 %s680, 16
                  %s682 = smul.u32 %s680, 16
                  %s683 = scalar_lea.vmem %s595, %s681 [#allocation9]
                  %s684 = scalar_lea.vmem %s606, %s682
                $region103: #{tpu_custom_call.1} parent=97 // loop_footer
                  %s668 = sadd.s32 %s666, 1
                $region104: #{tpu_custom_call.1} parent=97 // loop_footer_branch
                  %665 = sbr.rel target = $region100
                $region105: #{tpu_custom_call.1} parent=97 // loop_exit
                  _
                %s685 = sshrl.u32 %s602, 1
                %s686 = sand.u32 %s602, 1
                %s687 = smul.u32 %s685, 2
                %s688 = smul.u32 8, %s687
                %s689 = scalar_lea.vmem %s595, %s688 [#allocation9]
                %s690 = smul.u32 8, %s687
                %s691 = scalar_lea.vmem %s606, %s690
                // While loop
                $region106: #{tpu_custom_call.1} parent=97 // loop_pre_header
                  _
                $region107: #{tpu_custom_call.1} parent=97 // loop_header
                  %s693 = sphi 0, %s695
                  %p694 = scmp.ge.s32.totalorder %s693, %s686
                  %s698 = sphi 0, %s705
                  %s699 = sphi %s689, %s708
                  %s700 = sphi %s691, %s709
                $region108: #{tpu_custom_call.1} parent=97 // loop_header_branch
                  %697 = sbr.rel (%p694) target = $region112
                $region109: #{tpu_custom_call.1} parent=97 // loop_body
                  %v701 = vld [vmem:[%s699] sm:$0xff]
                  %702 = vst [vmem:[%s700] sm:$0xff] %v701
                  %s703 = sadd.s32 1, %s698
                  %p704 = scmp.ge.s32.totalorder %s703, %s686
                  %s705 = scalar_select %p704, 0, %s703
                  %s706 = smul.u32 %s705, 8
                  %s707 = smul.u32 %s705, 8
                  %s708 = scalar_lea.vmem %s689, %s706 [#allocation9]
                  %s709 = scalar_lea.vmem %s691, %s707
                $region110: #{tpu_custom_call.1} parent=97 // loop_footer
                  %s695 = sadd.s32 %s693, 1
                $region111: #{tpu_custom_call.1} parent=97 // loop_footer_branch
                  %692 = sbr.rel target = $region107
                $region112: #{tpu_custom_call.1} parent=97 // loop_exit
                  _
              $region98: #{tpu_custom_call.1} parent=75 // pred_fallthru
                _
              // Predicated region
              $region113: #{tpu_custom_call.1} parent=75 // pred_check
                _
              $region114: #{tpu_custom_call.1} parent=75 // pred_check_branch
                %711 = sbr.rel target = $region116
              $region115: #{tpu_custom_call.1} parent=75 // pred_region
                _
              $region116: #{tpu_custom_call.1} parent=75 // pred_fallthru
                _
            $region76: #{tpu_custom_call.1} parent=71 // pred_fallthru
              _
            // Predicated region
            $region77: #{tpu_custom_call.1} parent=71 // pred_check
              _
            $region78: #{tpu_custom_call.1} parent=71 // pred_check_branch
              %613 = sbr.rel target = $region80
            $region79: #{tpu_custom_call.1} parent=71 // pred_region
              %s615 = ssub.s32 256, 1
              %s616 = sshrl.u32 %s602, 1
              // While loop
              $region81: #{tpu_custom_call.1} parent=79 // loop_pre_header
                _
              $region82: #{tpu_custom_call.1} parent=79 // loop_header
                %s618 = sphi 0, %s620
                %p619 = scmp.ge.s32.totalorder %s618, %s616
                %s623 = sphi 0, %s632
                %s624 = sphi %s595, %s635
                %s625 = sphi %s606, %s636
              $region83: #{tpu_custom_call.1} parent=79 // loop_header_branch
                %622 = sbr.rel (%p619) target = $region87
              $region84: #{tpu_custom_call.1} parent=79 // loop_body
                %v626 = vld [vmem:[%s624] sm:%s615]
                %627 = vst [vmem:[%s625] sm:%s615] %v626
                %v628 = vld [vmem:[%s624 + $0x8] sm:%s615]
                %629 = vst [vmem:[%s625 + $0x8] sm:%s615] %v628
                %s630 = sadd.s32 1, %s623
                %p631 = scmp.ge.s32.totalorder %s630, %s616
                %s632 = scalar_select %p631, 0, %s630
                %s633 = smul.u32 %s632, 16
                %s634 = smul.u32 %s632, 16
                %s635 = scalar_lea.vmem %s595, %s633 [#allocation9]
                %s636 = scalar_lea.vmem %s606, %s634
              $region85: #{tpu_custom_call.1} parent=79 // loop_footer
                %s620 = sadd.s32 %s618, 1
              $region86: #{tpu_custom_call.1} parent=79 // loop_footer_branch
                %617 = sbr.rel target = $region82
              $region87: #{tpu_custom_call.1} parent=79 // loop_exit
                _
              %s637 = sshrl.u32 %s602, 1
              %s638 = sand.u32 %s602, 1
              %s639 = smul.u32 %s637, 2
              %s640 = smul.u32 8, %s639
              %s641 = scalar_lea.vmem %s595, %s640 [#allocation9]
              %s642 = smul.u32 8, %s639
              %s643 = scalar_lea.vmem %s606, %s642
              // While loop
              $region88: #{tpu_custom_call.1} parent=79 // loop_pre_header
                _
              $region89: #{tpu_custom_call.1} parent=79 // loop_header
                %s645 = sphi 0, %s647
                %p646 = scmp.ge.s32.totalorder %s645, %s638
                %s650 = sphi 0, %s657
                %s651 = sphi %s641, %s660
                %s652 = sphi %s643, %s661
              $region90: #{tpu_custom_call.1} parent=79 // loop_header_branch
                %649 = sbr.rel (%p646) target = $region94
              $region91: #{tpu_custom_call.1} parent=79 // loop_body
                %v653 = vld [vmem:[%s651] sm:%s615]
                %654 = vst [vmem:[%s652] sm:%s615] %v653
                %s655 = sadd.s32 1, %s650
                %p656 = scmp.ge.s32.totalorder %s655, %s638
                %s657 = scalar_select %p656, 0, %s655
                %s658 = smul.u32 %s657, 8
                %s659 = smul.u32 %s657, 8
                %s660 = scalar_lea.vmem %s641, %s658 [#allocation9]
                %s661 = scalar_lea.vmem %s643, %s659
              $region92: #{tpu_custom_call.1} parent=79 // loop_footer
                %s647 = sadd.s32 %s645, 1
              $region93: #{tpu_custom_call.1} parent=79 // loop_footer_branch
                %644 = sbr.rel target = $region89
              $region94: #{tpu_custom_call.1} parent=79 // loop_exit
                _
            $region80: #{tpu_custom_call.1} parent=71 // pred_fallthru
              _
          $region72: #{tpu_custom_call.1} parent=67 // pred_fallthru
            _
          %712 = vnop
        $region68: #{tpu_custom_call.1} parent=47 // pred_fallthru
          _
      $region48: #{tpu_custom_call.1} parent=5 // pred_fallthru
        _
      %p713 = scmp.le.s32.totalorder 2, %s18
      // Predicated region
      $region117: #{tpu_custom_call.1} parent=5 // pred_check
        %p714 = pneg %p713
      $region118: #{tpu_custom_call.1} parent=5 // pred_check_branch
        %716 = sbr.rel (%p714) target = $region120
      $region119: #{tpu_custom_call.1} parent=5 // pred_region
        %s717 = ssub.s32 %s18, 2
        // Predicated region
        $region121: #{tpu_custom_call.1} parent=119 // pred_check
          %p718 = pneg %p199
        $region122: #{tpu_custom_call.1} parent=119 // pred_check_branch
          %720 = sbr.rel (%p718) target = $region124
        $region123: #{tpu_custom_call.1} parent=119 // pred_region
          %s721 = sand.u32 %s184, 1
          %s722 = sand.u32 %s184, 1
          %s723 = smul.addr %s722, 16
          %s724 = scalar_lea.vmem [#allocation9], %s723
        $region124: #{tpu_custom_call.1} parent=119 // pred_fallthru
          _
      $region120: #{tpu_custom_call.1} parent=5 // pred_fallthru
        _
    $region6: #{tpu_custom_call.1} parent=1 // loop_footer
      %s22 = sadd.s32 1, %s18
    $region7: #{tpu_custom_call.1} parent=1 // loop_footer_branch
      %17 = sbr.rel target = $region3
    $region8: #{tpu_custom_call.1} parent=1 // loop_exit
      _
    %725 = vsyncpa [#allocation3], 1
    %s726 = scalar_lea.sflag [#allocation3], 1
    %727 = vsyncpa %s726, 1
    %728 = vsyncpa [#allocation5], 1
    %729 = vsyncpa [#allocation8], 1

</llo_original>
